<compile_context>
chip_gen: v7x
topology: tpu7x:2x2x1
jax: 0.10.0
libtpu: 0.0.40
codegen_flags: <defaults>
</compile_context>

<pallas_src>
import functools
import math

import jax
import jax.numpy as jnp
from jax.experimental import pallas as pl
from jax.experimental.pallas import tpu as pltpu

EPS = 1e-5  # PyTorch BatchNorm1d default


def _round_up(n, m):
    return ((n + m - 1) // m) * m


# ------------------------------- kernel ------------------------------------ #
def prediction_mlp_kernel(x_ref, w1_ref, g1_ref, b1_ref, w2_ref, b2_ref,
                          out_ref, sum_ref, ssq_ref, scale_ref, shift_ref,
                          *, inv_n, compute_dtype):
    """Grid = (2, n_tiles). phase 0: BN statistics; phase 1: output tiles."""
    phase = pl.program_id(0)
    tile = pl.program_id(1)
    n_tiles = pl.num_programs(1)

    # Linear(in_dim, hidden, bias=False) -> MXU.  Needed in both phases
    # (recomputed in phase 1 instead of materializing the full [N, H] z1).
    z1 = jnp.dot(x_ref[...].astype(compute_dtype),
                 w1_ref[...].astype(compute_dtype),
                 preferred_element_type=jnp.float32)

    @pl.when(phase == 0)
    def _stats_pass():
        @pl.when(tile == 0)
        def _init():
            sum_ref[...] = jnp.zeros_like(sum_ref)
            ssq_ref[...] = jnp.zeros_like(ssq_ref)

        # Single reduction pass: sum and sum-of-squares together.
        sum_ref[...] += jnp.sum(z1, axis=0, keepdims=True)
        ssq_ref[...] += jnp.sum(z1 * z1, axis=0, keepdims=True)

        @pl.when(tile == n_tiles - 1)
        def _finalize():
            mu = sum_ref[...] * inv_n
            # Clamp: E[x^2] - mu^2 can go slightly negative in f32.
            var = jnp.maximum(ssq_ref[...] * inv_n - mu * mu, 0.0)
            scale = g1_ref[...] * jax.lax.rsqrt(var + EPS)       # EUP slot
            scale_ref[...] = scale
            shift_ref[...] = b1_ref[...] - mu * scale

    @pl.when(phase == 1)
    def _output_pass():
        # Folded BatchNorm + ReLU: two VALU ops per element.
        h = jnp.maximum(z1 * scale_ref[...] + shift_ref[...], 0.0)
        # Linear(hidden, out_dim) with bias -> MXU.
        y = jnp.dot(h.astype(compute_dtype), w2_ref[...].astype(compute_dtype),
                    preferred_element_type=jnp.float32) + b2_ref[...]
        out_ref[...] = y.astype(out_ref.dtype)


# ------------------------------- wrapper ------------------------------------ #
def prediction_mlp_forward(x, params, *, tile_n=256, use_bf16=None):
    """x: [N, in_dim] -> [N, out_dim] (PyTorch training-mode BN semantics)."""
    N, din = x.shape
    hid = params["w1"].shape[1]
    dout = params["w2"].shape[1]

    if use_bf16 is None:
        # bf16 MXU passes only pay off once the matmuls dominate launch/DMA
        # latency; keep f32 for small batches so we track the f32 reference.
        use_bf16 = (x.dtype == jnp.bfloat16) or N >= 1024
    compute_dtype = jnp.bfloat16 if use_bf16 else jnp.float32

    # Batch tiling: sublane-aligned tiles; pad with zero rows (zero rows give
    # z1 == 0, contributing nothing to the BN sums; inv_n uses the TRUE N).
    tile_n = _round_up(max(8, min(tile_n, _round_up(N, 8))), 8)
    n_pad = _round_up(N, tile_n)
    x_p = jnp.pad(x, ((0, n_pad - N), (0, 0))) if n_pad != N else x
    n_tiles = n_pad // tile_n

    kernel = functools.partial(prediction_mlp_kernel,
                               inv_n=1.0 / N, compute_dtype=compute_dtype)

    # Rough VMEM budget: double-buffered x/out tiles + resident weights + BN
    # scratch, with headroom.  Explicit limit lifts v5e's 16 MiB default while
    # staying inside v7x's 64 MiB physical VMEM.
    itemsize = jnp.dtype(x.dtype).itemsize
    vmem_est = (2 * tile_n * din * itemsize
                + 2 * tile_n * dout * 4
                + 2 * 4 * (din * hid + hid * dout + 3 * hid + dout)
                + 4 * 4 * hid)
    vmem_limit = int(min(max(2 * vmem_est, 16 << 20), 96 << 20))

    flops = 2 * n_pad * din * hid * 2 + 2 * n_pad * hid * dout + 5 * n_pad * hid
    bytes_accessed = (2 * n_pad * din * itemsize                      # x, read twice
                      + 4 * (din * hid + hid * dout + 3 * hid + dout)  # weights
                      + n_pad * dout * itemsize)                       # output
    cost = pl.CostEstimate(flops=int(flops), transcendentals=int(hid),
                           bytes_accessed=int(bytes_accessed))

    grid_spec = pltpu.PrefetchScalarGridSpec(
        num_scalar_prefetch=0,
        grid=(2, n_tiles),
        in_specs=[
            pl.BlockSpec((tile_n, din), lambda p, t: (t, 0)),   # x tile
            pl.BlockSpec((din, hid),    lambda p, t: (0, 0)),   # w1 (resident)
            pl.BlockSpec((1, hid),      lambda p, t: (0, 0)),   # gamma
            pl.BlockSpec((1, hid),      lambda p, t: (0, 0)),   # beta
            pl.BlockSpec((hid, dout),   lambda p, t: (0, 0)),   # w2 (resident)
            pl.BlockSpec((1, dout),     lambda p, t: (0, 0)),   # bias2
        ],
        # Phase 0 keeps output block 0 resident (never written back, never
        # holds garbage on HBM); phase 1 walks the batch tiles.
        out_specs=pl.BlockSpec((tile_n, dout), lambda p, t: (p * t, 0)),
        scratch_shapes=[pltpu.VMEM((1, hid), jnp.float32),   # sum
                        pltpu.VMEM((1, hid), jnp.float32),   # sum of squares
                        pltpu.VMEM((1, hid), jnp.float32),   # folded scale
                        pltpu.VMEM((1, hid), jnp.float32)],  # folded shift
    )

    out = pl.pallas_call(
        kernel,
        out_shape=jax.ShapeDtypeStruct((n_pad, dout), x.dtype),
        grid_spec=grid_spec,
        compiler_params=pltpu.CompilerParams(
            # Shared BN scratch across tiles + phase-1-after-phase-0 ordering
            # -> both axes must stay sequential.
            dimension_semantics=("arbitrary", "arbitrary"),
            vmem_limit_bytes=vmem_limit),
        cost_estimate=cost,
    )(x_p, params["w1"], params["g1"], params["b1"], params["w2"], params["b2"])

    return out[:N] if n_pad != N else out


# ------------------------------ reference ----------------------------------- #
def prediction_mlp_ref(x, params):
    """Pure-JAX reference (PyTorch training-mode semantics)."""
    z1 = x @ params["w1"]
    mu = jnp.mean(z1, axis=0, keepdims=True)
    var = jnp.mean((z1 - mu) ** 2, axis=0, keepdims=True)
    h = (z1 - mu) / jnp.sqrt(var + EPS) * params["g1"] + params["b1"]
    h = jnp.maximum(h, 0.0)
    return h @ params["w2"] + params["b2"]


def init_params(key, in_dim, hidden_dim, out_dim):
    k1, k2, k3 = jax.random.split(key, 3)
    bound1 = 1.0 / math.sqrt(in_dim)
    bound2 = 1.0 / math.sqrt(hidden_dim)
    # Linear(in_dim, hidden, bias=False); weights stored [in, out] for x @ w.
    w1 = jax.random.uniform(k1, (in_dim, hidden_dim), jnp.float32,
                            -bound1, bound1)
    # BatchNorm1d default affine init: gamma = 1, beta = 0.
    g1 = jnp.ones((1, hidden_dim), jnp.float32)
    b1 = jnp.zeros((1, hidden_dim), jnp.float32)
    # Linear(hidden, out_dim) with bias.
    w2 = jax.random.uniform(k2, (hidden_dim, out_dim), jnp.float32,
                            -bound2, bound2)
    b2 = jax.random.uniform(k3, (1, out_dim), jnp.float32, -bound2, bound2)
    return dict(w1=w1, g1=g1, b1=b1, w2=w2, b2=b2)


if __name__ == "__main__":
    key = jax.random.PRNGKey(0)
    kx, kp = jax.random.split(key)

    # Small, lane-dense shapes consistent with PredictionMLP(in, hidden, out).
    # N=12 with tile_n=8 exercises zero-padding, multi-tile BN accumulation
    # (true-N inv_n) and both grid phases.
    N, DIN, DHID, DOUT = 12, 256, 128, 128
    x = jax.random.normal(kx, (N, DIN), jnp.float32)
    params = init_params(kp, DIN, DHID, DOUT)

    fwd = jax.jit(functools.partial(prediction_mlp_forward, tile_n=8))
    out = jax.block_until_ready(fwd(x, params))
    assert out.shape == (N, DOUT) and out.dtype == jnp.float32

    ref = prediction_mlp_ref(x, params)
    assert jnp.allclose(out, ref, atol=1e-4, rtol=1e-4), "mismatch vs reference"
    print("KERNEL_OK")
</pallas_src>

<mosaic_0001>
module attributes {stable_mosaic.version = 11 : i64} {
  func.func @prediction_mlp_kernel(%arg0: i32, %arg1: i32, %arg2: memref<8x256xf32, #tpu.memory_space<vmem>>, %arg3: memref<256x128xf32, #tpu.memory_space<vmem>>, %arg4: memref<1x128xf32, #tpu.memory_space<vmem>>, %arg5: memref<1x128xf32, #tpu.memory_space<vmem>>, %arg6: memref<128x128xf32, #tpu.memory_space<vmem>>, %arg7: memref<1x128xf32, #tpu.memory_space<vmem>>, %arg8: memref<8x128xf32, #tpu.memory_space<vmem>>, %arg9: memref<1x128xf32, #tpu.memory_space<vmem>>, %arg10: memref<1x128xf32, #tpu.memory_space<vmem>>, %arg11: memref<1x128xf32, #tpu.memory_space<vmem>>, %arg12: memref<1x128xf32, #tpu.memory_space<vmem>>) attributes {dimension_semantics = [#tpu.dimension_semantics<arbitrary>, #tpu.dimension_semantics<arbitrary>], iteration_bounds = array<i64: 2, 2>, scalar_prefetch = 0 : i64, scratch_operands = 4 : i64, tpu.core_type = #tpu.core_type<tc>, window_params = [{transform_indices = @transform_0, window_bounds = array<i64: 8, 256>}, {pipeline_mode = #tpu.pipeline_mode<synchronous>, transform_indices = @transform_1, window_bounds = array<i64: 256, 128>}, {pipeline_mode = #tpu.pipeline_mode<synchronous>, transform_indices = @transform_2, window_bounds = array<i64: 1, 128>}, {pipeline_mode = #tpu.pipeline_mode<synchronous>, transform_indices = @transform_3, window_bounds = array<i64: 1, 128>}, {pipeline_mode = #tpu.pipeline_mode<synchronous>, transform_indices = @transform_4, window_bounds = array<i64: 128, 128>}, {pipeline_mode = #tpu.pipeline_mode<synchronous>, transform_indices = @transform_5, window_bounds = array<i64: 1, 128>}, {transform_indices = @transform_6, window_bounds = array<i64: 8, 128>}]} {
    %c0 = arith.constant 0 : index
    %c0_0 = arith.constant 0 : index
    %0 = vector.load %arg2[%c0, %c0_0] : memref<8x256xf32, #tpu.memory_space<vmem>>, vector<8x256xf32>
    %c0_1 = arith.constant 0 : index
    %c0_2 = arith.constant 0 : index
    %1 = vector.load %arg3[%c0_1, %c0_2] : memref<256x128xf32, #tpu.memory_space<vmem>>, vector<256x128xf32>
    %cst = arith.constant dense<0.000000e+00> : vector<8x128xf32>
    %2 = tpu.matmul %0, %1, %cst {dimension_numbers = #tpu.dot_dimension_numbers<[1], [0], [0], [1], [0, 0, 1, 1], [], []>} : vector<8x256xf32>, vector<256x128xf32>, vector<8x128xf32> -> vector<8x128xf32>
    %c0_i32 = arith.constant 0 : i32
    %3 = arith.cmpi eq, %arg0, %c0_i32 : i32
    %4 = arith.extui %3 : i1 to i32
    %c0_i32_3 = arith.constant 0 : i32
    %5 = arith.cmpi ne, %4, %c0_i32_3 : i32
    scf.if %5 {
      %c0_i32_5 = arith.constant 0 : i32
      %9 = arith.cmpi eq, %arg1, %c0_i32_5 : i32
      %10 = arith.extui %9 : i1 to i32
      %c0_i32_6 = arith.constant 0 : i32
      %11 = arith.cmpi ne, %10, %c0_i32_6 : i32
      scf.if %11 {
        %cst_19 = arith.constant 0.000000e+00 : f32
        %26 = vector.broadcast %cst_19 : f32 to vector<1x128xf32>
        %c0_20 = arith.constant 0 : index
        %c0_21 = arith.constant 0 : index
        %27 = vector.load %arg9[%c0_20, %c0_21] : memref<1x128xf32, #tpu.memory_space<vmem>>, vector<1x128xf32>
        tpu.vector_store %arg9[%c0_20, %c0_21], %26 {strides = array<i32>} : memref<1x128xf32, #tpu.memory_space<vmem>>, vector<1x128xf32>,
        %cst_22 = arith.constant 0.000000e+00 : f32
        %28 = vector.broadcast %cst_22 : f32 to vector<1x128xf32>
        %c0_23 = arith.constant 0 : index
        %c0_24 = arith.constant 0 : index
        %29 = vector.load %arg10[%c0_23, %c0_24] : memref<1x128xf32, #tpu.memory_space<vmem>>, vector<1x128xf32>
        tpu.vector_store %arg10[%c0_23, %c0_24], %28 {strides = array<i32>} : memref<1x128xf32, #tpu.memory_space<vmem>>, vector<1x128xf32>,
      } else {
      }
      %c0_7 = arith.constant 0 : index
      %c0_8 = arith.constant 0 : index
      %12 = vector.load %arg9[%c0_7, %c0_8] : memref<1x128xf32, #tpu.memory_space<vmem>>, vector<1x128xf32>
      %cst_9 = arith.constant dense<0.000000e+00> : vector<128xf32>
      %13 = vector.multi_reduction <add>, %2, %cst_9 [0] : vector<8x128xf32> to vector<128xf32>
      %14 = vector.shape_cast %13 : vector<128xf32> to vector<1x128xf32>
      %15 = arith.addf %12, %14 : vector<1x128xf32>
      %c0_10 = arith.constant 0 : index
      %c0_11 = arith.constant 0 : index
      %16 = vector.load %arg9[%c0_10, %c0_11] : memref<1x128xf32, #tpu.memory_space<vmem>>, vector<1x128xf32>
      tpu.vector_store %arg9[%c0_10, %c0_11], %15 {strides = array<i32>} : memref<1x128xf32, #tpu.memory_space<vmem>>, vector<1x128xf32>,
      %c0_12 = arith.constant 0 : index
      %c0_13 = arith.constant 0 : index
      %17 = vector.load %arg10[%c0_12, %c0_13] : memref<1x128xf32, #tpu.memory_space<vmem>>, vector<1x128xf32>
      %18 = arith.mulf %2, %2 : vector<8x128xf32>
      %cst_14 = arith.constant dense<0.000000e+00> : vector<128xf32>
      %19 = vector.multi_reduction <add>, %18, %cst_14 [0] : vector<8x128xf32> to vector<128xf32>
      %20 = vector.shape_cast %19 : vector<128xf32> to vector<1x128xf32>
      %21 = arith.addf %17, %20 : vector<1x128xf32>
      %c0_15 = arith.constant 0 : index
      %c0_16 = arith.constant 0 : index
      %22 = vector.load %arg10[%c0_15, %c0_16] : memref<1x128xf32, #tpu.memory_space<vmem>>, vector<1x128xf32>
      tpu.vector_store %arg10[%c0_15, %c0_16], %21 {strides = array<i32>} : memref<1x128xf32, #tpu.memory_space<vmem>>, vector<1x128xf32>,
      %c1_i32_17 = arith.constant 1 : i32
      %23 = arith.cmpi eq, %arg1, %c1_i32_17 : i32
      %24 = arith.extui %23 : i1 to i32
      %c0_i32_18 = arith.constant 0 : i32
      %25 = arith.cmpi ne, %24, %c0_i32_18 : i32
      scf.if %25 {
        %c0_19 = arith.constant 0 : index
        %c0_20 = arith.constant 0 : index
        %26 = vector.load %arg9[%c0_19, %c0_20] : memref<1x128xf32, #tpu.memory_space<vmem>>, vector<1x128xf32>
        %cst_21 = arith.constant 0.0833333358 : f32
        %27 = vector.broadcast %cst_21 : f32 to vector<1x128xf32>
        %28 = arith.mulf %26, %27 : vector<1x128xf32>
        %c0_22 = arith.constant 0 : index
        %c0_23 = arith.constant 0 : index
        %29 = vector.load %arg10[%c0_22, %c0_23] : memref<1x128xf32, #tpu.memory_space<vmem>>, vector<1x128xf32>
        %cst_24 = arith.constant 0.0833333358 : f32
        %30 = vector.broadcast %cst_24 : f32 to vector<1x128xf32>
        %31 = arith.mulf %29, %30 : vector<1x128xf32>
        %32 = arith.mulf %28, %28 : vector<1x128xf32>
        %33 = arith.subf %31, %32 : vector<1x128xf32>
        %cst_25 = arith.constant 0.000000e+00 : f32
        %34 = vector.broadcast %cst_25 : f32 to vector<1x128xf32>
        %35 = arith.maximumf %33, %34 : vector<1x128xf32>
        %c0_26 = arith.constant 0 : index
        %c0_27 = arith.constant 0 : index
        %36 = vector.load %arg4[%c0_26, %c0_27] : memref<1x128xf32, #tpu.memory_space<vmem>>, vector<1x128xf32>
        %cst_28 = arith.constant 9.99999974E-6 : f32
        %37 = vector.broadcast %cst_28 : f32 to vector<1x128xf32>
        %38 = arith.addf %35, %37 : vector<1x128xf32>
        %39 = math.rsqrt %38 : vector<1x128xf32>
        %40 = arith.mulf %36, %39 : vector<1x128xf32>
        %c0_29 = arith.constant 0 : index
        %c0_30 = arith.constant 0 : index
        %41 = vector.load %arg11[%c0_29, %c0_30] : memref<1x128xf32, #tpu.memory_space<vmem>>, vector<1x128xf32>
        tpu.vector_store %arg11[%c0_29, %c0_30], %40 {strides = array<i32>} : memref<1x128xf32, #tpu.memory_space<vmem>>, vector<1x128xf32>,
        %c0_31 = arith.constant 0 : index
        %c0_32 = arith.constant 0 : index
        %42 = vector.load %arg5[%c0_31, %c0_32] : memref<1x128xf32, #tpu.memory_space<vmem>>, vector<1x128xf32>
        %43 = arith.mulf %28, %40 : vector<1x128xf32>
        %44 = arith.subf %42, %43 : vector<1x128xf32>
        %c0_33 = arith.constant 0 : index
        %c0_34 = arith.constant 0 : index
        %45 = vector.load %arg12[%c0_33, %c0_34] : memref<1x128xf32, #tpu.memory_space<vmem>>, vector<1x128xf32>
        tpu.vector_store %arg12[%c0_33, %c0_34], %44 {strides = array<i32>} : memref<1x128xf32, #tpu.memory_space<vmem>>, vector<1x128xf32>,
      } else {
      }
    } else {
    }
    %c1_i32 = arith.constant 1 : i32
    %6 = arith.cmpi eq, %arg0, %c1_i32 : i32
    %7 = arith.extui %6 : i1 to i32
    %c0_i32_4 = arith.constant 0 : i32
    %8 = arith.cmpi ne, %7, %c0_i32_4 : i32
    scf.if %8 {
      %c0_5 = arith.constant 0 : index
      %c0_6 = arith.constant 0 : index
      %9 = vector.load %arg11[%c0_5, %c0_6] : memref<1x128xf32, #tpu.memory_space<vmem>>, vector<1x128xf32>
      %10 = vector.broadcast %9 : vector<1x128xf32> to vector<8x128xf32>
      %11 = arith.mulf %2, %10 : vector<8x128xf32>
      %c0_7 = arith.constant 0 : index
      %c0_8 = arith.constant 0 : index
      %12 = vector.load %arg12[%c0_7, %c0_8] : memref<1x128xf32, #tpu.memory_space<vmem>>, vector<1x128xf32>
      %13 = vector.broadcast %12 : vector<1x128xf32> to vector<8x128xf32>
      %14 = arith.addf %11, %13 : vector<8x128xf32>
      %cst_9 = arith.constant 0.000000e+00 : f32
      %15 = vector.broadcast %cst_9 : f32 to vector<8x128xf32>
      %16 = arith.maximumf %14, %15 : vector<8x128xf32>
      %c0_10 = arith.constant 0 : index
      %c0_11 = arith.constant 0 : index
      %17 = vector.load %arg6[%c0_10, %c0_11] : memref<128x128xf32, #tpu.memory_space<vmem>>, vector<128x128xf32>
      %cst_12 = arith.constant dense<0.000000e+00> : vector<8x128xf32>
      %18 = tpu.matmul %16, %17, %cst_12 {dimension_numbers = #tpu.dot_dimension_numbers<[1], [0], [0], [1], [0, 0, 1, 1], [], []>} : vector<8x128xf32>, vector<128x128xf32>, vector<8x128xf32> -> vector<8x128xf32>
      %c0_13 = arith.constant 0 : index
      %c0_14 = arith.constant 0 : index
      %19 = vector.load %arg7[%c0_13, %c0_14] : memref<1x128xf32, #tpu.memory_space<vmem>>, vector<1x128xf32>
      %20 = vector.broadcast %19 : vector<1x128xf32> to vector<8x128xf32>
      %21 = arith.addf %18, %20 : vector<8x128xf32>
      %c0_15 = arith.constant 0 : index
      %c0_16 = arith.constant 0 : index
      %22 = vector.load %arg8[%c0_15, %c0_16] : memref<8x128xf32, #tpu.memory_space<vmem>>, vector<8x128xf32>
      tpu.vector_store %arg8[%c0_15, %c0_16], %21 {strides = array<i32>} : memref<8x128xf32, #tpu.memory_space<vmem>>, vector<8x128xf32>,
    } else {
    }
    return
  }
  func.func @transform_0(%arg0: i32, %arg1: i32) -> (i32, i32) {
    %c0_i32 = arith.constant 0 : i32
    %c0_i32_0 = arith.constant 0 : i32
    return %arg1, %c0_i32 : i32, i32
  }
  func.func @transform_1(%arg0: i32, %arg1: i32) -> (i32, i32) {
    %c0_i32 = arith.constant 0 : i32
    %c0_i32_0 = arith.constant 0 : i32
    %c0_i32_1 = arith.constant 0 : i32
    return %c0_i32, %c0_i32_0 : i32, i32
  }
  func.func @transform_2(%arg0: i32, %arg1: i32) -> (i32, i32) {
    %c0_i32 = arith.constant 0 : i32
    %c0_i32_0 = arith.constant 0 : i32
    %c0_i32_1 = arith.constant 0 : i32
    return %c0_i32, %c0_i32_0 : i32, i32
  }
  func.func @transform_3(%arg0: i32, %arg1: i32) -> (i32, i32) {
    %c0_i32 = arith.constant 0 : i32
    %c0_i32_0 = arith.constant 0 : i32
    %c0_i32_1 = arith.constant 0 : i32
    return %c0_i32, %c0_i32_0 : i32, i32
  }
  func.func @transform_4(%arg0: i32, %arg1: i32) -> (i32, i32) {
    %c0_i32 = arith.constant 0 : i32
    %c0_i32_0 = arith.constant 0 : i32
    %c0_i32_1 = arith.constant 0 : i32
    return %c0_i32, %c0_i32_0 : i32, i32
  }
  func.func @transform_5(%arg0: i32, %arg1: i32) -> (i32, i32) {
    %c0_i32 = arith.constant 0 : i32
    %c0_i32_0 = arith.constant 0 : i32
    %c0_i32_1 = arith.constant 0 : i32
    return %c0_i32, %c0_i32_0 : i32, i32
  }
  func.func @transform_6(%arg0: i32, %arg1: i32) -> (i32, i32) {
    %0 = arith.muli %arg0, %arg1 : i32
    %c0_i32 = arith.constant 0 : i32
    %c0_i32_0 = arith.constant 0 : i32
    return %0, %c0_i32 : i32, i32
  }
}

</mosaic_0001>

<llo_original>
// kernel: prediction_mlp_forward.1
$region0: #{prediction_mlp_forward.1}
  #allocation0 [shape = 'u32[]', space=smem, size = 0x4, offset = 0x4, fixed_abs, tag = 'smem constant byte address 0x4 - core index']
  #allocation1 [shape = 'u32[144,128]{1,0:T(1,128)}', space=vmem, size = 0x12000, scoped, tag = 'internal scratch']
  #allocation2 [shape = 'f32[1,128]{1,0:T(1,128)}', space=vmem, size = 0x200, scoped, tag = 'scratch operand']
  #allocation3 [shape = 'f32[1,128]{1,0:T(1,128)}', space=vmem, size = 0x200, scoped, tag = 'scratch operand']
  #allocation4 [shape = 'f32[1,128]{1,0:T(1,128)}', space=vmem, size = 0x200, scoped, tag = 'scratch operand']
  #allocation5 [shape = 'f32[1,128]{1,0:T(1,128)}', space=vmem, size = 0x200, scoped, tag = 'scratch operand']
  %s0 = inlined_call_operand.vmem [shape: f32[16,256], index: 0, kind: input, shape index: {}]
  %s1 = inlined_call_operand.hbm [shape: f32[256,128], index: 1, kind: input, shape index: {}]
  %s2 = inlined_call_operand.vmem [shape: f32[1,128], index: 2, kind: input, shape index: {}]
  %s3 = inlined_call_operand.vmem [shape: f32[1,128], index: 3, kind: input, shape index: {}]
  %s4 = inlined_call_operand.hbm [shape: f32[128,128], index: 4, kind: input, shape index: {}]
  %s5 = inlined_call_operand.vmem [shape: f32[1,128], index: 5, kind: input, shape index: {}]
  %s6 = inlined_call_operand.hbm [shape: f32[16,128], index: 6, kind: output, shape index: {}]
  %s7 = sld [smem:[#allocation0]]
  $region81: #{prediction_mlp_forward.1} parent=0
    _
  %s9 = ssub.s32 1, %s7
  %s10 = scalar_select 0, %s9, %s7
  $region1: #{prediction_mlp_forward.1} parent=0
    #allocation6 [shape = 'u8[131072]{0}', space=vmem, size = 0x20000, scoped, tag = 'input window, operand 1, single buffered']
    #allocation7 [shape = 's32[2]{0}', space=sflag, size = 0x8, scoped, tag = 'scoped memory for prediction_mlp_forward.1']
    #allocation8 [shape = 's32[2]{0}', space=sflag, size = 0x8, scoped, tag = 'scoped memory for prediction_mlp_forward.1']
    #allocation9 [shape = 'u8[65536]{0}', space=vmem, size = 0x10000, scoped, tag = 'input window, operand 4, single buffered']
    #allocation10 [shape = 's32[1]{0}', space=sflag, size = 0x4, scoped, tag = 'scoped memory for prediction_mlp_forward.1']
    #allocation11 [shape = 'u8[8192]{0}', space=vmem, size = 0x2000, scoped, tag = 'output window, operand 0']
    %11 = vsyncpa [#allocation7], 0
    %12 = vsyncpa [#allocation10], 0
    %13 = vsyncpa [#allocation8], 0
    %s14 = scalar_lea.sflag [#allocation8], 1
    %15 = vsyncpa %s14, 0
    loop: start=0, step=1, limit=6
    $region2: #{prediction_mlp_forward.1} parent=1 // loop_pre_header
      _
    $region3: #{prediction_mlp_forward.1} parent=1 // loop_header
      %s17 = sphi 0, %s21
      %p18 = scmp.ge.s32.totalorder %s17, 6
      %s24 = sphi 0, %s36
      %s25 = sphi 0, %s32
      %s26 = sphi 0, %s24
      %s27 = sphi 0, %s25
      %s28 = sphi 0, %s26
      %s29 = sphi 0, %s27
      %s39 = sphi 0, %s41
      %s42 = sphi 0, %s39
      %s43 = sphi 0, %s42
      %s59 = sphi 0, %s43
      %s63 = sphi 0, %s63
      %s65 = sphi 0, %s63
      %s66 = sphi 0, %s65
      %s80 = sphi 0, %s66
      %s84 = sphi 0, %s84
      %s86 = sphi 0, %s84
      %s87 = sphi 0, %s86
      %s101 = sphi 0, %s87
      %s105 = sphi 0, %s105
      %s107 = sphi 0, %s105
      %s108 = sphi 0, %s107
      %s122 = sphi 0, %s108
      %s126 = sphi 0, %s126
      %s128 = sphi 0, %s126
      %s129 = sphi 0, %s128
      %s143 = sphi 0, %s129
      %s147 = sphi 0, %s147
      %s149 = sphi 0, %s147
      %s150 = sphi 0, %s149
      %s164 = sphi 0, %s150
      %s172 = sphi 0, %s174
      %s175 = sphi 0, %s172
      %s176 = sphi 0, %s175
      %s192 = sphi 0, %s176
    $region4: #{prediction_mlp_forward.1} parent=1 // loop_header_branch
      %20 = sbr.rel (%p18) target = $region8
    $region5: #{prediction_mlp_forward.1} parent=1 // loop_body
      %s22 = ssub.s32 %s17, 1
      %s23 = ssub.s32 %s17, 2
      %s30 = sadd.s32 1, %s25
      %p31 = scmp.ge.s32.totalorder %s30, 2
      %s32 = scalar_select %p31, 0, %s30
      %s33 = sadd.s32 1, %s24
      %s34 = scalar_select %p31, %s33, %s24
      %p35 = scmp.ge.s32.totalorder %s34, 2
      %s36 = scalar_select %p35, 0, %s34
      %s37 = ssub.s32 %s25, %s32
      %p38 = scmp.eq.s32.totalorder %s37, 0
      %s40 = sadd.s32 %s39, 1
      %s41 = scalar_select %p38, %s39, %s40
      %p44 = pneg %p38
      %p45 = scmp.eq.s32.totalorder %s17, 3
      %p46 = por %p44, %p45
      %p47 = scmp.ne.s32.totalorder %s39, %s42
      %p48 = scmp.eq.s32.totalorder %s17, 0
      %p49 = por %p47, %p48
      %p50 = scmp.ne.s32.totalorder %s39, %s42
      %p51 = scmp.eq.s32.totalorder %s22, 3
      %p52 = por %p50, %p51
      %p53 = scmp.ne.s32.totalorder %s42, %s43
      %p54 = scmp.eq.s32.totalorder %s22, 0
      %p55 = por %p53, %p54
      %p56 = scmp.ne.s32.totalorder %s42, %s43
      %p57 = scmp.eq.s32.totalorder %s23, 3
      %p58 = por %p56, %p57
      %p60 = scmp.ne.s32.totalorder %s43, %s59
      %p61 = scmp.eq.s32.totalorder %s23, 0
      %p62 = por %p60, %p61
      %s64 = sadd.s32 %s63, 1
      %p67 = scmp.eq.s32.totalorder %s17, 3
      %p68 = scmp.ne.s32.totalorder %s63, %s65
      %p69 = scmp.eq.s32.totalorder %s17, 0
      %p70 = por %p68, %p69
      %p71 = scmp.ne.s32.totalorder %s63, %s65
      %p72 = scmp.eq.s32.totalorder %s22, 3
      %p73 = por %p71, %p72
      %p74 = scmp.ne.s32.totalorder %s65, %s66
      %p75 = scmp.eq.s32.totalorder %s22, 0
      %p76 = por %p74, %p75
      %p77 = scmp.ne.s32.totalorder %s65, %s66
      %p78 = scmp.eq.s32.totalorder %s23, 3
      %p79 = por %p77, %p78
      %p81 = scmp.ne.s32.totalorder %s66, %s80
      %p82 = scmp.eq.s32.totalorder %s23, 0
      %p83 = por %p81, %p82
      %s85 = sadd.s32 %s84, 1
      %p88 = scmp.eq.s32.totalorder %s17, 3
      %p89 = scmp.ne.s32.totalorder %s84, %s86
      %p90 = scmp.eq.s32.totalorder %s17, 0
      %p91 = por %p89, %p90
      %p92 = scmp.ne.s32.totalorder %s84, %s86
      %p93 = scmp.eq.s32.totalorder %s22, 3
      %p94 = por %p92, %p93
      %p95 = scmp.ne.s32.totalorder %s86, %s87
      %p96 = scmp.eq.s32.totalorder %s22, 0
      %p97 = por %p95, %p96
      %p98 = scmp.ne.s32.totalorder %s86, %s87
      %p99 = scmp.eq.s32.totalorder %s23, 3
      %p100 = por %p98, %p99
      %p102 = scmp.ne.s32.totalorder %s87, %s101
      %p103 = scmp.eq.s32.totalorder %s23, 0
      %p104 = por %p102, %p103
      %s106 = sadd.s32 %s105, 1
      %p109 = scmp.eq.s32.totalorder %s17, 3
      %p110 = scmp.ne.s32.totalorder %s105, %s107
      %p111 = scmp.eq.s32.totalorder %s17, 0
      %p112 = por %p110, %p111
      %p113 = scmp.ne.s32.totalorder %s105, %s107
      %p114 = scmp.eq.s32.totalorder %s22, 3
      %p115 = por %p113, %p114
      %p116 = scmp.ne.s32.totalorder %s107, %s108
      %p117 = scmp.eq.s32.totalorder %s22, 0
      %p118 = por %p116, %p117
      %p119 = scmp.ne.s32.totalorder %s107, %s108
      %p120 = scmp.eq.s32.totalorder %s23, 3
      %p121 = por %p119, %p120
      %p123 = scmp.ne.s32.totalorder %s108, %s122
      %p124 = scmp.eq.s32.totalorder %s23, 0
      %p125 = por %p123, %p124
      %s127 = sadd.s32 %s126, 1
      %p130 = scmp.eq.s32.totalorder %s17, 3
      %p131 = scmp.ne.s32.totalorder %s126, %s128
      %p132 = scmp.eq.s32.totalorder %s17, 0
      %p133 = por %p131, %p132
      %p134 = scmp.ne.s32.totalorder %s126, %s128
      %p135 = scmp.eq.s32.totalorder %s22, 3
      %p136 = por %p134, %p135
      %p137 = scmp.ne.s32.totalorder %s128, %s129
      %p138 = scmp.eq.s32.totalorder %s22, 0
      %p139 = por %p137, %p138
      %p140 = scmp.ne.s32.totalorder %s128, %s129
      %p141 = scmp.eq.s32.totalorder %s23, 3
      %p142 = por %p140, %p141
      %p144 = scmp.ne.s32.totalorder %s129, %s143
      %p145 = scmp.eq.s32.totalorder %s23, 0
      %p146 = por %p144, %p145
      %s148 = sadd.s32 %s147, 1
      %p151 = scmp.eq.s32.totalorder %s17, 3
      %p152 = scmp.ne.s32.totalorder %s147, %s149
      %p153 = scmp.eq.s32.totalorder %s17, 0
      %p154 = por %p152, %p153
      %p155 = scmp.ne.s32.totalorder %s147, %s149
      %p156 = scmp.eq.s32.totalorder %s22, 3
      %p157 = por %p155, %p156
      %p158 = scmp.ne.s32.totalorder %s149, %s150
      %p159 = scmp.eq.s32.totalorder %s22, 0
      %p160 = por %p158, %p159
      %p161 = scmp.ne.s32.totalorder %s149, %s150
      %p162 = scmp.eq.s32.totalorder %s23, 3
      %p163 = por %p161, %p162
      %p165 = scmp.ne.s32.totalorder %s150, %s164
      %p166 = scmp.eq.s32.totalorder %s23, 0
      %p167 = por %p165, %p166
      %s168 = smul.u32 %s24, %s25
      %s169 = smul.u32 %s36, %s32
      %s170 = ssub.s32 %s168, %s169
      %p171 = scmp.eq.s32.totalorder %s170, 0
      %s173 = sadd.s32 %s172, 1
      %s174 = scalar_select %p171, %s172, %s173
      %p177 = pneg %p171
      %p178 = scmp.eq.s32.totalorder %s17, 3
      %p179 = por %p177, %p178
      %p180 = scmp.ne.s32.totalorder %s172, %s175
      %p181 = scmp.eq.s32.totalorder %s17, 0
      %p182 = por %p180, %p181
      %p183 = scmp.ne.s32.totalorder %s172, %s175
      %p184 = scmp.eq.s32.totalorder %s22, 3
      %p185 = por %p183, %p184
      %p186 = scmp.ne.s32.totalorder %s175, %s176
      %p187 = scmp.eq.s32.totalorder %s22, 0
      %p188 = por %p186, %p187
      %p189 = scmp.ne.s32.totalorder %s175, %s176
      %p190 = scmp.eq.s32.totalorder %s23, 3
      %p191 = por %p189, %p190
      %p193 = scmp.ne.s32.totalorder %s176, %s192
      %p194 = scmp.eq.s32.totalorder %s23, 0
      %p195 = por %p193, %p194
      %p196 = scmp.le.s32.totalorder 1, %s17
      %p197 = scmp.lt.s32.totalorder %s17, 5
      %p198 = pnand %p196, %p197
      %p199 = pneg %p198
      // Predicated region
      $region9: #{prediction_mlp_forward.1} parent=5 // pred_check
        _
      $region10: #{prediction_mlp_forward.1} parent=5 // pred_check_branch
        %201 = sbr.rel (%p198) target = $region12
      $region11: #{prediction_mlp_forward.1} parent=5 // pred_region
        %s202 = ssub.s32 %s17, 1
        // Predicated region
        $region13: #{prediction_mlp_forward.1} parent=11 // pred_check
          %p203 = pneg %p76
        $region14: #{prediction_mlp_forward.1} parent=11 // pred_check_branch
          %205 = sbr.rel (%p203) target = $region16
        $region15: #{prediction_mlp_forward.1} parent=11 // pred_region
          %s207 = ssub.s32 4096, 4096
          %208 = vsyncadd [#allocation7], %s207
          %s209 = sshll.u32 [#allocation6], 4
          %s210 = int_to_ptr.vmem [resolvable:$true] %s209
          %215 = dma.hbm_to_vmem [thread:$0]  %s1, 4096, %s210, [#allocation7], 128, 128, 8
        $region16: #{prediction_mlp_forward.1} parent=11 // pred_fallthru
          _
        // Predicated region
        $region17: #{prediction_mlp_forward.1} parent=11 // pred_check
          %p216 = pneg %p97
        $region18: #{prediction_mlp_forward.1} parent=11 // pred_check_branch
          %218 = sbr.rel (%p216) target = $region20
        $region19: #{prediction_mlp_forward.1} parent=11 // pred_region
          _
        $region20: #{prediction_mlp_forward.1} parent=11 // pred_fallthru
          _
        // Predicated region
        $region21: #{prediction_mlp_forward.1} parent=11 // pred_check
          %p219 = pneg %p118
        $region22: #{prediction_mlp_forward.1} parent=11 // pred_check_branch
          %221 = sbr.rel (%p219) target = $region24
        $region23: #{prediction_mlp_forward.1} parent=11 // pred_region
          _
        $region24: #{prediction_mlp_forward.1} parent=11 // pred_fallthru
          _
        // Predicated region
        $region25: #{prediction_mlp_forward.1} parent=11 // pred_check
          %p222 = pneg %p139
        $region26: #{prediction_mlp_forward.1} parent=11 // pred_check_branch
          %224 = sbr.rel (%p222) target = $region28
        $region27: #{prediction_mlp_forward.1} parent=11 // pred_region
          %s226 = ssub.s32 2048, 2048
          %227 = vsyncadd [#allocation10], %s226
          %s228 = sshll.u32 [#allocation9], 4
          %s229 = int_to_ptr.vmem [resolvable:$true] %s228
          %234 = dma.hbm_to_vmem [thread:$0]  %s4, 2048, %s229, [#allocation10], 128, 128, 8
        $region28: #{prediction_mlp_forward.1} parent=11 // pred_fallthru
          _
        // Predicated region
        $region29: #{prediction_mlp_forward.1} parent=11 // pred_check
          %p235 = pneg %p160
        $region30: #{prediction_mlp_forward.1} parent=11 // pred_check_branch
          %237 = sbr.rel (%p235) target = $region32
        $region31: #{prediction_mlp_forward.1} parent=11 // pred_region
          _
        $region32: #{prediction_mlp_forward.1} parent=11 // pred_fallthru
          _
      $region12: #{prediction_mlp_forward.1} parent=5 // pred_fallthru
        _
      %p238 = scmp.lt.s32.totalorder %s17, 4
      // Predicated region
      $region33: #{prediction_mlp_forward.1} parent=5 // pred_check
        %p239 = pneg %p238
      $region34: #{prediction_mlp_forward.1} parent=5 // pred_check_branch
        %241 = sbr.rel (%p239) target = $region36
      $region35: #{prediction_mlp_forward.1} parent=5 // pred_region
        // Predicated region
        $region37: #{prediction_mlp_forward.1} parent=35 // pred_check
          %p242 = pneg %p49
        $region38: #{prediction_mlp_forward.1} parent=35 // pred_check_branch
          %244 = sbr.rel (%p242) target = $region40
        $region39: #{prediction_mlp_forward.1} parent=35 // pred_region
          %p245 = scmp.lt.s32.totalorder %s25, 1
          %s246 = scalar_select %p245, %s25, 1
          %s247 = smul.addr %s246, 2
          %s248 = smul.addr %s247, 8
          %s249 = scalar_lea.vmem %s0, %s248
        $region40: #{prediction_mlp_forward.1} parent=35 // pred_fallthru
          _
      $region36: #{prediction_mlp_forward.1} parent=5 // pred_fallthru
        _
      %p250 = scmp.le.s32.totalorder 1, %s17
      %p251 = scmp.lt.s32.totalorder %s17, 5
      %p252 = pnand %p250, %p251
      %p253 = pneg %p252
      // Predicated region
      $region41: #{prediction_mlp_forward.1} parent=5 // pred_check
        _
      $region42: #{prediction_mlp_forward.1} parent=5 // pred_check_branch
        %255 = sbr.rel (%p252) target = $region44
      $region43: #{prediction_mlp_forward.1} parent=5 // pred_region
        %s256 = ssub.s32 %s17, 1
        // Predicated region
        $region45: #{prediction_mlp_forward.1} parent=43 // pred_check
          %p257 = pneg %p76
        $region46: #{prediction_mlp_forward.1} parent=43 // pred_check_branch
          %259 = sbr.rel (%p257) target = $region48
        $region47: #{prediction_mlp_forward.1} parent=43 // pred_region
          %260 = dma.done [#allocation7], 4096
        $region48: #{prediction_mlp_forward.1} parent=43 // pred_fallthru
          _
        // Predicated region
        $region49: #{prediction_mlp_forward.1} parent=43 // pred_check
          %p261 = pneg %p139
        $region50: #{prediction_mlp_forward.1} parent=43 // pred_check_branch
          %263 = sbr.rel (%p261) target = $region52
        $region51: #{prediction_mlp_forward.1} parent=43 // pred_region
          %264 = dma.done [#allocation10], 2048
        $region52: #{prediction_mlp_forward.1} parent=43 // pred_fallthru
          _
        %p265 = scmp.lt.s32.totalorder %s27, 1
        %s266 = scalar_select %p265, %s27, 1
        %s267 = smul.addr %s266, 2
        %s268 = smul.addr %s267, 8
        %s269 = scalar_lea.vmem %s0, %s268
        %p270 = pneg %p55
        %p271 = pneg %p52
        %p272 = pneg %p76
        %p273 = pneg %p73
        %p274 = pneg %p97
        %p275 = pneg %p94
        %p276 = pneg %p118
        %p277 = pneg %p115
        %p278 = pneg %p139
        %p279 = pneg %p136
        %p280 = pneg %p160
        %p281 = pneg %p157
        %p282 = pneg %p188
        %p283 = pneg %p185
        %s284 = sand.u32 %s175, 1
        %s285 = scalar_lea.sflag [#allocation8], %s284
        %s286 = sand.u32 %s175, 1
        %s287 = smul.addr %s286, 8
        %s288 = scalar_lea.vmem [#allocation11], %s287
        %p289 = scmp.lt.s32.totalorder %s27, 1
        %s290 = scalar_select %p289, %s27, 1
        %s291 = smul.addr %s290, 2
        %s292 = smul.addr %s291, 8
        %s293 = scalar_lea.vmem %s0, %s292
        %s294 = smul.u32 %s26, %s27
        %v295 = vld [vmem:[%s293] sm:$0xff]
        %v296 = vld [vmem:[%s293 + $0x8] sm:$0xff]
        %v297 = vld [vmem:[#allocation6] sm:$0xff]
        %v298 = vld [vmem:[#allocation6 + $0x8] sm:$0xff]
        %v299 = vld [vmem:[#allocation6 + $0x10] sm:$0xff]
        %v300 = vld [vmem:[#allocation6 + $0x18] sm:$0xff]
        %v301 = vld [vmem:[#allocation6 + $0x20] sm:$0xff]
        %v302 = vld [vmem:[#allocation6 + $0x28] sm:$0xff]
        %v303 = vld [vmem:[#allocation6 + $0x30] sm:$0xff]
        %v304 = vld [vmem:[#allocation6 + $0x38] sm:$0xff]
        %v305 = vld [vmem:[#allocation6 + $0x40] sm:$0xff]
        %v306 = vld [vmem:[#allocation6 + $0x48] sm:$0xff]
        %v307 = vld [vmem:[#allocation6 + $0x50] sm:$0xff]
        %v308 = vld [vmem:[#allocation6 + $0x58] sm:$0xff]
        %v309 = vld [vmem:[#allocation6 + $0x60] sm:$0xff]
        %v310 = vld [vmem:[#allocation6 + $0x68] sm:$0xff]
        %v311 = vld [vmem:[#allocation6 + $0x70] sm:$0xff]
        %v312 = vld [vmem:[#allocation6 + $0x78] sm:$0xff]
        %v313 = vld [vmem:[#allocation6 + $0x80] sm:$0xff]
        %v314 = vld [vmem:[#allocation6 + $0x88] sm:$0xff]
        %v315 = vld [vmem:[#allocation6 + $0x90] sm:$0xff]
        %v316 = vld [vmem:[#allocation6 + $0x98] sm:$0xff]
        %v317 = vld [vmem:[#allocation6 + $0xa0] sm:$0xff]
        %v318 = vld [vmem:[#allocation6 + $0xa8] sm:$0xff]
        %v319 = vld [vmem:[#allocation6 + $0xb0] sm:$0xff]
        %v320 = vld [vmem:[#allocation6 + $0xb8] sm:$0xff]
        %v321 = vld [vmem:[#allocation6 + $0xc0] sm:$0xff]
        %v322 = vld [vmem:[#allocation6 + $0xc8] sm:$0xff]
        %v323 = vld [vmem:[#allocation6 + $0xd0] sm:$0xff]
        %v324 = vld [vmem:[#allocation6 + $0xd8] sm:$0xff]
        %v325 = vld [vmem:[#allocation6 + $0xe0] sm:$0xff]
        %v326 = vld [vmem:[#allocation6 + $0xe8] sm:$0xff]
        %v327 = vld [vmem:[#allocation6 + $0xf0] sm:$0xff]
        %v328 = vld [vmem:[#allocation6 + $0xf8] sm:$0xff]
        %329 = vmatprep.subr.mxu0 0.0
        %330 = vmatpush1.msra.mxu0 %v297
        %331 = vmatprep.subr.mxu0 0.0
        %332 = vmatpush1.msra.mxu0 %v298
        %333 = vmatprep.subr.mxu0 0.0
        %334 = vmatpush1.msra.mxu0 %v299
        %335 = vmatprep.subr.mxu0 0.0
        %336 = vmatpush1.msra.mxu0 %v300
        %337 = vmatprep.subr.mxu0 0.0
        %338 = vmatpush1.msra.mxu0 %v301
        %339 = vmatprep.subr.mxu0 0.0
        %340 = vmatpush1.msra.mxu0 %v302
        %341 = vmatprep.subr.mxu0 0.0
        %342 = vmatpush1.msra.mxu0 %v303
        %343 = vmatprep.subr.mxu0 0.0
        %344 = vmatpush1.msra.mxu0 %v304
        %345 = vmatprep.subr.mxu0 0.0
        %346 = vmatpush1.msra.mxu0 %v305
        %347 = vmatprep.subr.mxu0 0.0
        %348 = vmatpush1.msra.mxu0 %v306
        %349 = vmatprep.subr.mxu0 0.0
        %350 = vmatpush1.msra.mxu0 %v307
        %351 = vmatprep.subr.mxu0 0.0
        %352 = vmatpush1.msra.mxu0 %v308
        %353 = vmatprep.subr.mxu0 0.0
        %354 = vmatpush1.msra.mxu0 %v309
        %355 = vmatprep.subr.mxu0 0.0
        %356 = vmatpush1.msra.mxu0 %v310
        %357 = vmatprep.subr.mxu0 0.0
        %358 = vmatpush1.msra.mxu0 %v311
        %359 = vmatprep.subr.mxu0 0.0
        %360 = vmatpush1.msra.mxu0 %v312
        %361 = vmatprep.subr.mxu0 0.0
        %362 = vmatpush1.msra.mxu0 %v313
        %363 = vmatprep.subr.mxu0 0.0
        %364 = vmatpush1.msra.mxu0 %v314
        %365 = vmatprep.subr.mxu0 0.0
        %366 = vmatpush1.msra.mxu0 %v315
        %367 = vmatprep.subr.mxu0 0.0
        %368 = vmatpush1.msra.mxu0 %v316
        %369 = vmatprep.subr.mxu0 0.0
        %370 = vmatpush1.msra.mxu0 %v317
        %371 = vmatprep.subr.mxu0 0.0
        %372 = vmatpush1.msra.mxu0 %v318
        %373 = vmatprep.subr.mxu0 0.0
        %374 = vmatpush1.msra.mxu0 %v319
        %375 = vmatprep.subr.mxu0 0.0
        %376 = vmatpush1.msra.mxu0 %v320
        %377 = vmatprep.subr.mxu0 0.0
        %378 = vmatpush1.msra.mxu0 %v321
        %379 = vmatprep.subr.mxu0 0.0
        %380 = vmatpush1.msra.mxu0 %v322
        %381 = vmatprep.subr.mxu0 0.0
        %382 = vmatpush1.msra.mxu0 %v323
        %383 = vmatprep.subr.mxu0 0.0
        %384 = vmatpush1.msra.mxu0 %v324
        %385 = vmatprep.subr.mxu0 0.0
        %386 = vmatpush1.msra.mxu0 %v325
        %387 = vmatprep.subr.mxu0 0.0
        %388 = vmatpush1.msra.mxu0 %v326
        %389 = vmatprep.subr.mxu0 0.0
        %390 = vmatpush1.msra.mxu0 %v327
        %391 = vmatprep.subr.mxu0 0.0
        %392 = vmatpush1.msra.mxu0 %v328
        %393 = vmatprep.mubr.f32.mxu0 %v296
        %394 = vmatmul.mubr.f32.gmra.mrb[0].mxu0 %v295
        %v395 = vpop.f32.mrb[0].mxu0
        %v396 = vadd.f32 0.0, %v395
        %v397 = vpop.f32.mrb[0].mxu0
        %398 = vdwg.mxu0
        %p399 = scmp.eq.s32.totalorder %s26, 0
        // Predicated region
        $region53: #{prediction_mlp_forward.1} parent=43 // pred_check
          %p400 = pneg %p399
        $region54: #{prediction_mlp_forward.1} parent=43 // pred_check_branch
          %402 = sbr.rel (%p400) target = $region56
        $region55: #{prediction_mlp_forward.1} parent=43 // pred_region
          %p403 = scmp.eq.s32.totalorder %s27, 0
          // Predicated region
          $region57: #{prediction_mlp_forward.1} parent=55 // pred_check
            %p404 = pneg %p403
          $region58: #{prediction_mlp_forward.1} parent=55 // pred_check_branch
            %406 = sbr.rel (%p404) target = $region60
          $region59: #{prediction_mlp_forward.1} parent=55 // pred_region
            %407 = vst [vmem:[#allocation2] sm:$0x1] 0.0
            %408 = vst [vmem:[#allocation3] sm:$0x1] 0.0
          $region60: #{prediction_mlp_forward.1} parent=55 // pred_fallthru
            _
          %v409 = vld [vmem:[#allocation2] sm:$0x1]
          %v410 = vrot.slane %v396, 4
          %v411 = vadd.f32 %v396, %v410
          %v412 = vrot.slane %v411, 2
          %v413 = vadd.f32 %v411, %v412
          %v414 = vrot.slane %v413, 1
          %v415 = vadd.f32 %v413, %v414
          %v416 = vadd.f32 %v409, %v415
          %417 = vst [vmem:[#allocation2] sm:$0x1] %v416
          %v418 = vld [vmem:[#allocation3] sm:$0x1]
          %v419 = vmul.f32 %v396, %v396
          %v420 = vrot.slane %v419, 4
          %v421 = vadd.f32 %v419, %v420
          %v422 = vrot.slane %v421, 2
          %v423 = vadd.f32 %v421, %v422
          %v424 = vrot.slane %v423, 1
          %v425 = vadd.f32 %v423, %v424
          %v426 = vadd.f32 %v418, %v425
          %427 = vst [vmem:[#allocation3] sm:$0x1] %v426
          %p428 = scmp.eq.s32.totalorder %s27, 1
          // Predicated region
          $region61: #{prediction_mlp_forward.1} parent=55 // pred_check
            %p429 = pneg %p428
          $region62: #{prediction_mlp_forward.1} parent=55 // pred_check_branch
            %431 = sbr.rel (%p429) target = $region64
          $region63: #{prediction_mlp_forward.1} parent=55 // pred_region
            %v432 = vld [vmem:[#allocation2] sm:$0x1]
            %v433 = vmul.f32 %v432, 0.083333336
            %v434 = vld [vmem:[#allocation3] sm:$0x1]
            %v435 = vmul.f32 %v434, 0.083333336
            %v436 = vmul.f32 %v433, %v433
            %v437 = vsub.f32 %v435, %v436
            %v438 = vmax.f32 %v437, 0.0
            %v439 = vld [vmem:[%s2] sm:$0x1]
            %v440 = vadd.f32 %v438, 1e-05
            %v441 = vrsqrt.pop %v440
            %v442 = vmul.f32 %v439, %v441
            %443 = vst [vmem:[#allocation4] sm:$0x1] %v442
            %v444 = vld [vmem:[%s3] sm:$0x1]
            %v445 = vmul.f32 %v433, %v442
            %v446 = vsub.f32 %v444, %v445
            %447 = vst [vmem:[#allocation5] sm:$0x1] %v446
          $region64: #{prediction_mlp_forward.1} parent=55 // pred_fallthru
            _
        $region56: #{prediction_mlp_forward.1} parent=43 // pred_fallthru
          _
        %p448 = scmp.eq.s32.totalorder %s26, 1
        // Predicated region
        $region65: #{prediction_mlp_forward.1} parent=43 // pred_check
          %p449 = pneg %p448
        $region66: #{prediction_mlp_forward.1} parent=43 // pred_check_branch
          %451 = sbr.rel (%p449) target = $region68
        $region67: #{prediction_mlp_forward.1} parent=43 // pred_region
          %v452 = vld [vmem:[#allocation4] sm:$0x1]
          %v454 = vlaneseq
          %v455 = vshrl.u32 %v454, 7
          %v456 = vsub.s32 0, %v455
          %v457 = vrot.slane %v452, %v456
          %v459 = vmul.f32 %v396, %v457
          %v460 = vld [vmem:[#allocation5] sm:$0x1]
          %v462 = vlaneseq
          %v463 = vshrl.u32 %v462, 7
          %v464 = vsub.s32 0, %v463
          %v465 = vrot.slane %v460, %v464
          %v467 = vadd.f32 %v459, %v465
          %v468 = vmax.f32 %v467, 0.0
          %v469 = vld [vmem:[#allocation9] sm:$0xff]
          %v470 = vld [vmem:[#allocation9 + $0x8] sm:$0xff]
          %v471 = vld [vmem:[#allocation9 + $0x10] sm:$0xff]
          %v472 = vld [vmem:[#allocation9 + $0x18] sm:$0xff]
          %v473 = vld [vmem:[#allocation9 + $0x20] sm:$0xff]
          %v474 = vld [vmem:[#allocation9 + $0x28] sm:$0xff]
          %v475 = vld [vmem:[#allocation9 + $0x30] sm:$0xff]
          %v476 = vld [vmem:[#allocation9 + $0x38] sm:$0xff]
          %v477 = vld [vmem:[#allocation9 + $0x40] sm:$0xff]
          %v478 = vld [vmem:[#allocation9 + $0x48] sm:$0xff]
          %v479 = vld [vmem:[#allocation9 + $0x50] sm:$0xff]
          %v480 = vld [vmem:[#allocation9 + $0x58] sm:$0xff]
          %v481 = vld [vmem:[#allocation9 + $0x60] sm:$0xff]
          %v482 = vld [vmem:[#allocation9 + $0x68] sm:$0xff]
          %v483 = vld [vmem:[#allocation9 + $0x70] sm:$0xff]
          %v484 = vld [vmem:[#allocation9 + $0x78] sm:$0xff]
          %v485 = vld [vmem:[%s5] sm:$0x1]
          %v487 = vlaneseq
          %v488 = vshrl.u32 %v487, 7
          %v489 = vsub.s32 0, %v488
          %v490 = vrot.slane %v485, %v489
          %492 = vmatprep.subr.mxu0 0.0
          %493 = vmatpush1.msra.mxu0 %v469
          %494 = vmatprep.subr.mxu0 0.0
          %495 = vmatpush1.msra.mxu0 %v470
          %496 = vmatprep.subr.mxu0 0.0
          %497 = vmatpush1.msra.mxu0 %v471
          %498 = vmatprep.subr.mxu0 0.0
          %499 = vmatpush1.msra.mxu0 %v472
          %500 = vmatprep.subr.mxu0 0.0
          %501 = vmatpush1.msra.mxu0 %v473
          %502 = vmatprep.subr.mxu0 0.0
          %503 = vmatpush1.msra.mxu0 %v474
          %504 = vmatprep.subr.mxu0 0.0
          %505 = vmatpush1.msra.mxu0 %v475
          %506 = vmatprep.subr.mxu0 0.0
          %507 = vmatpush1.msra.mxu0 %v476
          %508 = vmatprep.subr.mxu0 0.0
          %509 = vmatpush1.msra.mxu0 %v477
          %510 = vmatprep.subr.mxu0 0.0
          %511 = vmatpush1.msra.mxu0 %v478
          %512 = vmatprep.subr.mxu0 0.0
          %513 = vmatpush1.msra.mxu0 %v479
          %514 = vmatprep.subr.mxu0 0.0
          %515 = vmatpush1.msra.mxu0 %v480
          %516 = vmatprep.subr.mxu0 0.0
          %517 = vmatpush1.msra.mxu0 %v481
          %518 = vmatprep.subr.mxu0 0.0
          %519 = vmatpush1.msra.mxu0 %v482
          %520 = vmatprep.subr.mxu0 0.0
          %521 = vmatpush1.msra.mxu0 %v483
          %522 = vmatprep.subr.mxu0 0.0
          %523 = vmatpush1.msra.mxu0 %v484
          %524 = vmatprep.subr.mxu0 0.0
          %525 = vmatpush1.msra.mxu0 0.0
          %526 = vmatprep.subr.mxu0 0.0
          %527 = vmatpush1.msra.mxu0 0.0
          %528 = vmatprep.subr.mxu0 0.0
          %529 = vmatpush1.msra.mxu0 0.0
          %530 = vmatprep.subr.mxu0 0.0
          %531 = vmatpush1.msra.mxu0 0.0
          %532 = vmatprep.subr.mxu0 0.0
          %533 = vmatpush1.msra.mxu0 0.0
          %534 = vmatprep.subr.mxu0 0.0
          %535 = vmatpush1.msra.mxu0 0.0
          %536 = vmatprep.subr.mxu0 0.0
          %537 = vmatpush1.msra.mxu0 0.0
          %538 = vmatprep.subr.mxu0 0.0
          %539 = vmatpush1.msra.mxu0 0.0
          %540 = vmatprep.subr.mxu0 0.0
          %541 = vmatpush1.msra.mxu0 0.0
          %542 = vmatprep.subr.mxu0 0.0
          %543 = vmatpush1.msra.mxu0 0.0
          %544 = vmatprep.subr.mxu0 0.0
          %545 = vmatpush1.msra.mxu0 0.0
          %546 = vmatprep.subr.mxu0 0.0
          %547 = vmatpush1.msra.mxu0 0.0
          %548 = vmatprep.subr.mxu0 0.0
          %549 = vmatpush1.msra.mxu0 0.0
          %550 = vmatprep.subr.mxu0 0.0
          %551 = vmatpush1.msra.mxu0 0.0
          %552 = vmatprep.subr.mxu0 0.0
          %553 = vmatpush1.msra.mxu0 0.0
          %554 = vmatprep.subr.mxu0 0.0
          %555 = vmatpush1.msra.mxu0 0.0
          %556 = vmatprep.mubr.f32.mxu0 0.0
          %557 = vmatmul.mubr.f32.gmra.mrb[0].mxu0 %v468
          %v558 = vpop.f32.mrb[0].mxu0
          %v559 = vadd.f32 %v490, %v558
          %v560 = vpop.f32.mrb[0].mxu0
          %561 = vdwg.mxu0
          %562 = vst [vmem:[%s288] sm:$0xff] %v559
        $region68: #{prediction_mlp_forward.1} parent=43 // pred_fallthru
          _
        %s563 = sand.u32 %s175, 1
        %s564 = scalar_lea.sflag [#allocation8], %s563
        %s565 = sand.u32 %s175, 1
        %s566 = smul.addr %s565, 8
        %s567 = scalar_lea.vmem [#allocation11], %s566
        // Predicated region
        $region69: #{prediction_mlp_forward.1} parent=43 // pred_check
          %p568 = pneg %p185
        $region70: #{prediction_mlp_forward.1} parent=43 // pred_check_branch
          %570 = sbr.rel (%p568) target = $region72
        $region71: #{prediction_mlp_forward.1} parent=43 // pred_region
          %s571 = smul.u32 %s26, %s27
          %s573 = ssub.s32 128, 128
          %574 = vsyncadd %s564, %s573
          %s575 = smul.addr %s571, 128
          %s576 = scalar_lea.hbm %s6, %s575
          %s578 = sshll.u32 %s567, 4
          %s579 = int_to_ptr.vmem [resolvable:$true] %s578
          %581 = dma.vmem_to_hbm [thread:$0]  %s579, 128, %s576, %s564
        $region72: #{prediction_mlp_forward.1} parent=43 // pred_fallthru
          _
      $region44: #{prediction_mlp_forward.1} parent=5 // pred_fallthru
        _
      %p582 = scmp.le.s32.totalorder 2, %s17
      // Predicated region
      $region73: #{prediction_mlp_forward.1} parent=5 // pred_check
        %p583 = pneg %p582
      $region74: #{prediction_mlp_forward.1} parent=5 // pred_check_branch
        %585 = sbr.rel (%p583) target = $region76
      $region75: #{prediction_mlp_forward.1} parent=5 // pred_region
        %s586 = ssub.s32 %s17, 2
        // Predicated region
        $region77: #{prediction_mlp_forward.1} parent=75 // pred_check
          %p587 = pneg %p191
        $region78: #{prediction_mlp_forward.1} parent=75 // pred_check_branch
          %589 = sbr.rel (%p587) target = $region80
        $region79: #{prediction_mlp_forward.1} parent=75 // pred_region
          %s590 = sand.u32 %s176, 1
          %s591 = scalar_lea.sflag [#allocation8], %s590
          %s592 = sand.u32 %s176, 1
          %s593 = smul.addr %s592, 8
          %s594 = scalar_lea.vmem [#allocation11], %s593
          %595 = dma.done %s591, 128
        $region80: #{prediction_mlp_forward.1} parent=75 // pred_fallthru
          _
      $region76: #{prediction_mlp_forward.1} parent=5 // pred_fallthru
        _
    $region6: #{prediction_mlp_forward.1} parent=1 // loop_footer
      %s21 = sadd.s32 1, %s17
    $region7: #{prediction_mlp_forward.1} parent=1 // loop_footer_branch
      %16 = sbr.rel target = $region3
    $region8: #{prediction_mlp_forward.1} parent=1 // loop_exit
      _
    %596 = vsyncpa [#allocation7], 1
    %s597 = scalar_lea.sflag [#allocation7], 1
    %598 = vsyncpa %s597, 1
    %599 = vsyncpa [#allocation10], 1
    %600 = vsyncpa [#allocation8], 1
    %s601 = scalar_lea.sflag [#allocation8], 1
    %602 = vsyncpa %s601, 1

</llo_original>
